<compile_context>
chip_gen: v7x
topology: tpu7x:2x2x1
jax: 0.10.0
libtpu: 0.0.40
codegen_flags: <defaults>
</compile_context>

<pallas_src>
import jax
import jax.numpy as jnp
from jax.experimental import pallas as pl
from jax.experimental.pallas import tpu as pltpu


# ---------------------------------------------------------------------------
# Small helpers
# ---------------------------------------------------------------------------
def _round_up(n, m):
    return ((n + m - 1) // m) * m


def _device_kind():
    try:
        return jax.devices()[0].device_kind.lower()
    except Exception:
        return ""


def _vmem_cap_bytes():
    """~80% of per-TensorCore VMEM (headroom for compiler internal scratch)."""
    cap = None
    try:
        cap = int(pltpu.get_tpu_info().vmem_capacity_bytes)
    except Exception:
        cap = None
    if not cap:
        kind = _device_kind()
        # v5e / v6e: 128 MiB per TensorCore.  v7x (and unknown): assume 64 MiB.
        cap = (128 << 20) if ("v5" in kind or "v6" in kind) else (64 << 20)
    return int(cap * 0.80)


def _lane_granularity():
    """v6e/v7x MXUs are 256-wide -> prefer 256-granular N/K dims; v5e etc: 128."""
    kind = _device_kind()
    if any(v in kind for v in ("v2", "v3", "v4", "v5")):
        return 128
    return 256


def _pad_dim(n, gran):
    p = _round_up(n, 128)
    if gran > 128 and p > gran and p % gran != 0:
        p = _round_up(p, gran)
    return p


def _pad_cast_2d(a, rows, cols, dtype):
    r, c = a.shape
    if (r, c) != (rows, cols):
        a = jnp.pad(a, ((0, rows - r), (0, cols - c)))
    return a.astype(dtype)  # no-op if already `dtype`


# ---------------------------------------------------------------------------
# Kernels
# ---------------------------------------------------------------------------
def _ffn_resident_kernel(x_ref, w1_ref, b1_ref, w2_ref, b2_ref, o_ref):
    """Weights fully VMEM-resident; one grid axis over row (token) tiles."""
    # Cast x to the matmul dtype in-kernel (no separate wrapper cast pass).
    x = x_ref[...].astype(w1_ref.dtype)
    h = jnp.dot(x, w1_ref[...], preferred_element_type=jnp.float32)
    # bias + ReLU in f32; the narrow cast is fused into the same elementwise pass.
    h = jnp.maximum(h + b1_ref[...], 0.0).astype(w2_ref.dtype)
    # dropout: identity (eval mode).
    y = jnp.dot(h, w2_ref[...], preferred_element_type=jnp.float32) + b2_ref[...]
    o_ref[...] = y.astype(o_ref.dtype)


def _ffn_stream_kernel(x_ref, w1_ref, b1_ref, w2_ref, b2_ref, o_ref, acc_ref):
    """Weights streamed over the hidden axis; f32 accumulator in VMEM scratch."""
    k = pl.program_id(1)

    @pl.when(k == 0)
    def _():
        acc_ref[...] = jnp.zeros_like(acc_ref)

    x = x_ref[...].astype(w1_ref.dtype)
    h = jnp.dot(x, w1_ref[...], preferred_element_type=jnp.float32)
    h = jnp.maximum(h + b1_ref[...], 0.0).astype(w2_ref.dtype)
    # dropout: identity (eval mode).
    acc_ref[...] += jnp.dot(h, w2_ref[...], preferred_element_type=jnp.float32)

    @pl.when(k == pl.num_programs(1) - 1)
    def _():
        o_ref[...] = (acc_ref[...] + b2_ref[...]).astype(o_ref.dtype)


# ---------------------------------------------------------------------------
# Wrapper
# ---------------------------------------------------------------------------
def prepare_ffn_params(w1, b1, w2, b2, *, use_bf16=True):
    """Pad/cast the weights ONCE; cache the result across forward calls."""
    d_model, hidden = w1.shape
    assert w2.shape == (hidden, d_model)
    assert b1.shape == (hidden,) and b2.shape == (d_model,)
    gran = _lane_granularity()
    d_pad = _pad_dim(d_model, gran)
    h_pad = _pad_dim(hidden, gran)
    mm_dtype = jnp.dtype(jnp.bfloat16) if use_bf16 else \
        jnp.dtype(jnp.promote_types(w1.dtype, jnp.float32))
    return dict(
        d_model=d_model, hidden=hidden, d_pad=d_pad, h_pad=h_pad,
        gran=gran, mm_dtype=mm_dtype,
        w1=_pad_cast_2d(w1, d_pad, h_pad, mm_dtype),
        w2=_pad_cast_2d(w2, h_pad, d_pad, mm_dtype),
        b1=_pad_cast_2d(b1.reshape(1, hidden), 1, h_pad, jnp.float32),
        b2=_pad_cast_2d(b2.reshape(1, d_model), 1, d_pad, jnp.float32),
    )


def apply_ffn(params, x, *, tm=None, out_dtype=None, stream=None,
              vmem_limit_bytes=None):
    """x: (..., d_model) -> (..., d_model). Dropout is identity (eval mode)."""
    d_model, hidden = params["d_model"], params["hidden"]
    d_pad, h_pad, gran = params["d_pad"], params["h_pad"], params["gran"]
    mm_dtype = params["mm_dtype"]
    mm_isize = mm_dtype.itemsize

    orig_shape = x.shape
    assert orig_shape[-1] == d_model
    M = 1
    for s in orig_shape[:-1]:
        M *= int(s)

    out_dtype = jnp.dtype(out_dtype) if out_dtype is not None else jnp.dtype(x.dtype)
    x_isize = jnp.dtype(x.dtype).itemsize
    o_isize = out_dtype.itemsize

    vmem_cap = int(vmem_limit_bytes) if vmem_limit_bytes is not None \
        else _vmem_cap_bytes()

    # -- resident vs hidden-streamed weights --------------------------------
    resident_w_bytes = 2 * d_pad * h_pad * mm_isize + (h_pad + d_pad) * 4
    if stream is None:
        stream = resident_w_bytes > 0.6 * vmem_cap

    def _row_tile(target):
        t = max(8, min(_round_up(target, 8), _round_up(M, 8)))
        mp = _round_up(M, t)
        # v7x has two TensorCores; keep >= 2 steps on the "parallel" row axis.
        while mp // t < 2 and t > 8:
            t = max(8, _round_up(t // 2, 8))
            mp = _round_up(M, t)
        return t, mp

    def _hidden_tile():
        th = min(h_pad, 512)
        while h_pad % th != 0:
            th -= gran
        return th

    def _vmem_estimate(is_stream, t, th, wbufs):
        if is_stream:
            w_term = 2 * (2 * d_pad * th * mm_isize + (th + d_pad) * 4)
            inter = t * th * 4 + t * d_pad * 4          # f32 h slab + accumulator
        else:
            w_term = wbufs * (2 * d_pad * h_pad * mm_isize + (h_pad + d_pad) * 4)
            inter = t * h_pad * 4                       # f32 intermediate h
        act = 2 * t * d_pad * (x_isize + o_isize)       # double-buffered x / out
        return w_term + act + inter

    if not stream:
        tm_r, m_pad = _row_tile(tm if tm is not None else 256)
        if vmem_limit_bytes is None and \
           _vmem_estimate(False, tm_r, h_pad, 1) > vmem_cap:
            stream = True            # resident weights don't fit -> stream them

    if stream:
        # Streamed weights are re-read once per row tile: keep the row tile big
        # (>=512) so FLOP/weight-byte stays above the HBM roofline on v6e/v7x.
        tm_r, m_pad = _row_tile(tm if tm is not None else 512)
        th = _hidden_tile()
    else:
        th = h_pad

    n_m = m_pad // tm_r
    n_k = h_pad // th

    # -- pad x (rows + lanes) only when actually needed ----------------------
    x2d = x.reshape(M, d_model)
    if (m_pad, d_pad) != (M, d_model):
        x2d = jnp.pad(x2d, ((0, m_pad - M), (0, d_pad - d_model)))

    cost = pl.CostEstimate(
        flops=4 * m_pad * d_pad * h_pad,
        transcendentals=0,
        bytes_accessed=int(m_pad * d_pad * (x_isize + o_isize)
                           + (n_m if stream else 1) * 2 * d_pad * h_pad * mm_isize
                           + (h_pad + d_pad) * 4),
    )
    out_shape = jax.ShapeDtypeStruct((m_pad, d_pad), out_dtype)
    w1p, b1p, w2p, b2p = params["w1"], params["b1"], params["w2"], params["b2"]

    if stream:
        est = _vmem_estimate(True, tm_r, th, 2)
        limit = vmem_cap if vmem_limit_bytes is not None \
            else min(vmem_cap, est + (8 << 20))
        grid_spec = pltpu.PrefetchScalarGridSpec(
            num_scalar_prefetch=0,
            grid=(n_m, n_k),
            in_specs=[
                pl.BlockSpec((tm_r, d_pad), lambda i, k: (i, 0)),   # x tile
                pl.BlockSpec((d_pad, th), lambda i, k: (0, k)),     # w1 block
                pl.BlockSpec((1, th), lambda i, k: (0, k)),         # b1 block
                pl.BlockSpec((th, d_pad), lambda i, k: (k, 0)),     # w2 block
                pl.BlockSpec((1, d_pad), lambda i, k: (0, 0)),      # b2
            ],
            out_specs=pl.BlockSpec((tm_r, d_pad), lambda i, k: (i, 0)),
            scratch_shapes=[pltpu.VMEM((tm_r, d_pad), jnp.float32)],
        )
        out2d = pl.pallas_call(
            _ffn_stream_kernel,
            out_shape=out_shape,
            grid_spec=grid_spec,
            compiler_params=pltpu.CompilerParams(
                dimension_semantics=("parallel", "arbitrary"),
                vmem_limit_bytes=int(limit)),
            cost_estimate=cost,
        )(x2d, w1p, b1p, w2p, b2p)
    else:
        def _call_resident(single_buf_weights):
            wbufs = 1 if single_buf_weights else 2
            est = _vmem_estimate(False, tm_r, h_pad, wbufs)
            limit = vmem_cap if vmem_limit_bytes is not None \
                else min(vmem_cap, est + (8 << 20))
            # Constant-index weights/biases need only one VMEM buffer.
            wmode = dict(pipeline_mode=pl.Buffered(1)) if single_buf_weights else {}
            grid_spec = pltpu.PrefetchScalarGridSpec(
                num_scalar_prefetch=0,
                grid=(n_m,),
                in_specs=[
                    pl.BlockSpec((tm_r, d_pad), lambda i: (i, 0)),            # x
                    pl.BlockSpec((d_pad, h_pad), lambda i: (0, 0), **wmode),  # w1
                    pl.BlockSpec((1, h_pad), lambda i: (0, 0), **wmode),      # b1
                    pl.BlockSpec((h_pad, d_pad), lambda i: (0, 0), **wmode),  # w2
                    pl.BlockSpec((1, d_pad), lambda i: (0, 0), **wmode),      # b2
                ],
                out_specs=pl.BlockSpec((tm_r, d_pad), lambda i: (i, 0)),
            )
            return pl.pallas_call(
                _ffn_resident_kernel,
                out_shape=out_shape,
                grid_spec=grid_spec,
                compiler_params=pltpu.CompilerParams(
                    dimension_semantics=("parallel",),
                    vmem_limit_bytes=int(limit)),
                cost_estimate=cost,
            )(x2d, w1p, b1p, w2p, b2p)

        try:
            out2d = _call_resident(True)
        except (TypeError, ValueError, NotImplementedError,
                pltpu.LoweringException):
            # Narrow fallback for builds rejecting Buffered(1): retry with the
            # default double buffering and a VMEM limit recomputed for it.
            out2d = _call_resident(False)

    if (m_pad, d_pad) != (M, d_model):
        out2d = out2d[:M, :d_model]
    return out2d.reshape(orig_shape)


def make_positionwise_ffn(w1, b1, w2, b2, *, use_bf16=True, out_dtype=None,
                          tm=None, stream=None):
    """Pads/casts the weights ONCE and returns a jitted apply(x) closure."""
    params = prepare_ffn_params(w1, b1, w2, b2, use_bf16=use_bf16)

    @jax.jit
    def apply(x):
        return apply_ffn(params, x, tm=tm, out_dtype=out_dtype, stream=stream)

    return apply


def positionwise_feed_forward(x, w1, b1, w2, b2, *, use_bf16=True, **kw):
    """Single-shot convenience wrapper (prepares params on every call)."""
    params = prepare_ffn_params(w1, b1, w2, b2, use_bf16=use_bf16)
    return apply_ffn(params, x, **kw)


def init_params(key, d_model, hidden):
    """Deterministic init mimicking nn.Linear (uniform +/- 1/sqrt(fan_in))."""
    k1, k2, k3, k4 = jax.random.split(key, 4)
    lim1 = 1.0 / jnp.sqrt(d_model)
    lim2 = 1.0 / jnp.sqrt(hidden)
    # stored as (in, out) = transpose of PyTorch's (out, in)
    w1 = jax.random.uniform(k1, (d_model, hidden), jnp.float32, -lim1, lim1)
    b1 = jax.random.uniform(k2, (hidden,), jnp.float32, -lim1, lim1)
    w2 = jax.random.uniform(k3, (hidden, d_model), jnp.float32, -lim2, lim2)
    b2 = jax.random.uniform(k4, (d_model,), jnp.float32, -lim2, lim2)
    return w1, b1, w2, b2


if __name__ == "__main__":
    B, S, d_model, hidden = 2, 8, 16, 32

    key = jax.random.PRNGKey(0)
    kx, kp = jax.random.split(key)
    x = jax.random.normal(kx, (B, S, d_model), jnp.float32)
    w1, b1, w2, b2 = init_params(kp, d_model, hidden)

    # Pure-JAX reference (dropout = identity, eval mode).
    ref = jnp.maximum(x @ w1 + b1, 0.0) @ w2 + b2

    # 1) Cached-weights, resident-weight path (the common case).
    ffn = make_positionwise_ffn(w1, b1, w2, b2)
    out = jax.block_until_ready(ffn(x))
    assert out.shape == (B, S, d_model)
    assert jnp.allclose(out, ref, atol=3e-2, rtol=3e-2), \
        float(jnp.max(jnp.abs(out - ref)))

    # 2) Hidden-streamed reduction-grid path (what large FFNs use on v7x),
    #    forced here for correctness coverage.
    out_s = positionwise_feed_forward(x, w1, b1, w2, b2, stream=True)
    out_s = jax.block_until_ready(out_s)
    assert out_s.shape == (B, S, d_model)
    assert jnp.allclose(out_s, ref, atol=3e-2, rtol=3e-2), \
        float(jnp.max(jnp.abs(out_s - ref)))

    print("KERNEL_OK")
</pallas_src>

<mosaic_0001>
module attributes {stable_mosaic.version = 11 : i64} {
  func.func @_ffn_resident_kernel(%arg0: i32, %arg1: memref<8x128xf32, #tpu.memory_space<vmem>>, %arg2: memref<128x128xbf16, #tpu.memory_space<vmem>>, %arg3: memref<1x128xf32, #tpu.memory_space<vmem>>, %arg4: memref<128x128xbf16, #tpu.memory_space<vmem>>, %arg5: memref<1x128xf32, #tpu.memory_space<vmem>>, %arg6: memref<8x128xf32, #tpu.memory_space<vmem>>) attributes {dimension_semantics = [#tpu.dimension_semantics<parallel>], iteration_bounds = array<i64: 2>, scalar_prefetch = 0 : i64, scratch_operands = 0 : i64, tpu.core_type = #tpu.core_type<tc>, window_params = [{transform_indices = @transform_0, window_bounds = array<i64: 8, 128>}, {pipeline_mode = #tpu.pipeline_mode<synchronous>, transform_indices = @transform_1, window_bounds = array<i64: 128, 128>}, {pipeline_mode = #tpu.pipeline_mode<synchronous>, transform_indices = @transform_2, window_bounds = array<i64: 1, 128>}, {pipeline_mode = #tpu.pipeline_mode<synchronous>, transform_indices = @transform_3, window_bounds = array<i64: 128, 128>}, {pipeline_mode = #tpu.pipeline_mode<synchronous>, transform_indices = @transform_4, window_bounds = array<i64: 1, 128>}, {transform_indices = @transform_5, window_bounds = array<i64: 8, 128>}]} {
    %c0 = arith.constant 0 : index
    %c0_0 = arith.constant 0 : index
    %0 = vector.load %arg1[%c0, %c0_0] : memref<8x128xf32, #tpu.memory_space<vmem>>, vector<8x128xf32>
    %1 = arith.truncf %0 : vector<8x128xf32> to vector<8x128xbf16>
    %c0_1 = arith.constant 0 : index
    %c0_2 = arith.constant 0 : index
    %2 = vector.load %arg2[%c0_1, %c0_2] : memref<128x128xbf16, #tpu.memory_space<vmem>>, vector<128x128xbf16>
    %cst = arith.constant dense<0.000000e+00> : vector<8x128xf32>
    %3 = tpu.matmul %1, %2, %cst {dimension_numbers = #tpu.dot_dimension_numbers<[1], [0], [0], [1], [0, 0, 1, 1], [], []>} : vector<8x128xbf16>, vector<128x128xbf16>, vector<8x128xf32> -> vector<8x128xf32>
    %c0_3 = arith.constant 0 : index
    %c0_4 = arith.constant 0 : index
    %4 = vector.load %arg3[%c0_3, %c0_4] : memref<1x128xf32, #tpu.memory_space<vmem>>, vector<1x128xf32>
    %5 = vector.broadcast %4 : vector<1x128xf32> to vector<8x128xf32>
    %6 = arith.addf %3, %5 : vector<8x128xf32>
    %cst_5 = arith.constant 0.000000e+00 : f32
    %7 = vector.broadcast %cst_5 : f32 to vector<8x128xf32>
    %8 = arith.maximumf %6, %7 : vector<8x128xf32>
    %9 = arith.truncf %8 : vector<8x128xf32> to vector<8x128xbf16>
    %c0_6 = arith.constant 0 : index
    %c0_7 = arith.constant 0 : index
    %10 = vector.load %arg4[%c0_6, %c0_7] : memref<128x128xbf16, #tpu.memory_space<vmem>>, vector<128x128xbf16>
    %cst_8 = arith.constant dense<0.000000e+00> : vector<8x128xf32>
    %11 = tpu.matmul %9, %10, %cst_8 {dimension_numbers = #tpu.dot_dimension_numbers<[1], [0], [0], [1], [0, 0, 1, 1], [], []>} : vector<8x128xbf16>, vector<128x128xbf16>, vector<8x128xf32> -> vector<8x128xf32>
    %c0_9 = arith.constant 0 : index
    %c0_10 = arith.constant 0 : index
    %12 = vector.load %arg5[%c0_9, %c0_10] : memref<1x128xf32, #tpu.memory_space<vmem>>, vector<1x128xf32>
    %13 = vector.broadcast %12 : vector<1x128xf32> to vector<8x128xf32>
    %14 = arith.addf %11, %13 : vector<8x128xf32>
    %c0_11 = arith.constant 0 : index
    %c0_12 = arith.constant 0 : index
    %15 = vector.load %arg6[%c0_11, %c0_12] : memref<8x128xf32, #tpu.memory_space<vmem>>, vector<8x128xf32>
    tpu.vector_store %arg6[%c0_11, %c0_12], %14 {strides = array<i32>} : memref<8x128xf32, #tpu.memory_space<vmem>>, vector<8x128xf32>,
    return
  }
  func.func @transform_0(%arg0: i32) -> (i32, i32) {
    %c0_i32 = arith.constant 0 : i32
    %c0_i32_0 = arith.constant 0 : i32
    return %arg0, %c0_i32 : i32, i32
  }
  func.func @transform_1(%arg0: i32) -> (i32, i32) {
    %c0_i32 = arith.constant 0 : i32
    %c0_i32_0 = arith.constant 0 : i32
    %c0_i32_1 = arith.constant 0 : i32
    return %c0_i32, %c0_i32_0 : i32, i32
  }
  func.func @transform_2(%arg0: i32) -> (i32, i32) {
    %c0_i32 = arith.constant 0 : i32
    %c0_i32_0 = arith.constant 0 : i32
    %c0_i32_1 = arith.constant 0 : i32
    return %c0_i32, %c0_i32_0 : i32, i32
  }
  func.func @transform_3(%arg0: i32) -> (i32, i32) {
    %c0_i32 = arith.constant 0 : i32
    %c0_i32_0 = arith.constant 0 : i32
    %c0_i32_1 = arith.constant 0 : i32
    return %c0_i32, %c0_i32_0 : i32, i32
  }
  func.func @transform_4(%arg0: i32) -> (i32, i32) {
    %c0_i32 = arith.constant 0 : i32
    %c0_i32_0 = arith.constant 0 : i32
    %c0_i32_1 = arith.constant 0 : i32
    return %c0_i32, %c0_i32_0 : i32, i32
  }
  func.func @transform_5(%arg0: i32) -> (i32, i32) {
    %c0_i32 = arith.constant 0 : i32
    %c0_i32_0 = arith.constant 0 : i32
    return %arg0, %c0_i32 : i32, i32
  }
}

</mosaic_0001>

<llo_original>
// kernel: apply.1
$region0: #{apply.1}
  #allocation0 [shape = 'u32[]', space=smem, size = 0x4, offset = 0x4, fixed_abs, tag = 'smem constant byte address 0x4 - core index']
  #allocation1 [shape = 'u32[144,128]{1,0:T(1,128)}', space=vmem, size = 0x12000, scoped, tag = 'internal scratch']
  %s0 = inlined_call_operand.vmem [shape: f32[16,128], index: 0, kind: input, shape index: {}]
  %s1 = inlined_call_operand.hbm [shape: bf16[128,128], index: 1, kind: input, shape index: {}]
  %s2 = inlined_call_operand.vmem [shape: f32[1,128], index: 2, kind: input, shape index: {}]
  %s3 = inlined_call_operand.hbm [shape: bf16[128,128], index: 3, kind: input, shape index: {}]
  %s4 = inlined_call_operand.vmem [shape: f32[1,128], index: 4, kind: input, shape index: {}]
  %s5 = inlined_call_operand.vmem [shape: f32[16,128], index: 5, kind: output, shape index: {}]
  %s6 = sld [smem:[#allocation0]]
  $region61: #{apply.1} parent=0
    _
  %s8 = ssub.s32 1, %s6
  %s9 = scalar_select 0, %s8, %s6
  $region1: #{apply.1} parent=0
    #allocation2 [shape = 'u8[32768]{0}', space=vmem, size = 0x8000, scoped, tag = 'input window, operand 1, single buffered']
    #allocation3 [shape = 's32[2]{0}', space=sflag, size = 0x8, scoped, tag = 'scoped memory for apply.1']
    #allocation4 [shape = 'u8[32768]{0}', space=vmem, size = 0x8000, scoped, tag = 'input window, operand 3, single buffered']
    #allocation5 [shape = 's32[1]{0}', space=sflag, size = 0x4, scoped, tag = 'scoped memory for apply.1']
    %10 = vsyncpa [#allocation3], 0
    %11 = vsyncpa [#allocation5], 0
    loop: start=0, step=1, limit=4
    $region2: #{apply.1} parent=1 // loop_pre_header
      _
    $region3: #{apply.1} parent=1 // loop_header
      %s13 = sphi 0, %s17
      %p14 = scmp.ge.s32.totalorder %s13, 4
      %s23 = sphi 0, %s25
      %s26 = sphi 0, %s23
      %s27 = sphi 0, %s26
      %s43 = sphi 0, %s27
      %s47 = sphi 0, %s47
      %s49 = sphi 0, %s47
      %s50 = sphi 0, %s49
      %s64 = sphi 0, %s50
      %s68 = sphi 0, %s68
      %s70 = sphi 0, %s68
      %s71 = sphi 0, %s70
      %s85 = sphi 0, %s71
      %s89 = sphi 0, %s89
      %s91 = sphi 0, %s89
      %s92 = sphi 0, %s91
      %s106 = sphi 0, %s92
      %s110 = sphi 0, %s110
      %s112 = sphi 0, %s110
      %s113 = sphi 0, %s112
      %s127 = sphi 0, %s113
      %s133 = sphi 0, %s135
      %s136 = sphi 0, %s133
      %s137 = sphi 0, %s136
      %s153 = sphi 0, %s137
    $region4: #{apply.1} parent=1 // loop_header_branch
      %16 = sbr.rel (%p14) target = $region8
    $region5: #{apply.1} parent=1 // loop_body
      %s18 = ssub.s32 %s13, 1
      %s19 = ssub.s32 %s13, 2
      %s20 = sadd.s32 %s13, 1
      %s21 = ssub.s32 %s13, %s20
      %p22 = scmp.eq.s32.totalorder %s21, 0
      %s24 = sadd.s32 %s23, 1
      %s25 = scalar_select %p22, %s23, %s24
      %p28 = pneg %p22
      %p29 = scmp.eq.s32.totalorder %s13, 1
      %p30 = por %p28, %p29
      %p31 = scmp.ne.s32.totalorder %s23, %s26
      %p32 = scmp.eq.s32.totalorder %s13, 0
      %p33 = por %p31, %p32
      %p34 = scmp.ne.s32.totalorder %s23, %s26
      %p35 = scmp.eq.s32.totalorder %s18, 1
      %p36 = por %p34, %p35
      %p37 = scmp.ne.s32.totalorder %s26, %s27
      %p38 = scmp.eq.s32.totalorder %s18, 0
      %p39 = por %p37, %p38
      %p40 = scmp.ne.s32.totalorder %s26, %s27
      %p41 = scmp.eq.s32.totalorder %s19, 1
      %p42 = por %p40, %p41
      %p44 = scmp.ne.s32.totalorder %s27, %s43
      %p45 = scmp.eq.s32.totalorder %s19, 0
      %p46 = por %p44, %p45
      %s48 = sadd.s32 %s47, 1
      %p51 = scmp.eq.s32.totalorder %s13, 1
      %p52 = scmp.ne.s32.totalorder %s47, %s49
      %p53 = scmp.eq.s32.totalorder %s13, 0
      %p54 = por %p52, %p53
      %p55 = scmp.ne.s32.totalorder %s47, %s49
      %p56 = scmp.eq.s32.totalorder %s18, 1
      %p57 = por %p55, %p56
      %p58 = scmp.ne.s32.totalorder %s49, %s50
      %p59 = scmp.eq.s32.totalorder %s18, 0
      %p60 = por %p58, %p59
      %p61 = scmp.ne.s32.totalorder %s49, %s50
      %p62 = scmp.eq.s32.totalorder %s19, 1
      %p63 = por %p61, %p62
      %p65 = scmp.ne.s32.totalorder %s50, %s64
      %p66 = scmp.eq.s32.totalorder %s19, 0
      %p67 = por %p65, %p66
      %s69 = sadd.s32 %s68, 1
      %p72 = scmp.eq.s32.totalorder %s13, 1
      %p73 = scmp.ne.s32.totalorder %s68, %s70
      %p74 = scmp.eq.s32.totalorder %s13, 0
      %p75 = por %p73, %p74
      %p76 = scmp.ne.s32.totalorder %s68, %s70
      %p77 = scmp.eq.s32.totalorder %s18, 1
      %p78 = por %p76, %p77
      %p79 = scmp.ne.s32.totalorder %s70, %s71
      %p80 = scmp.eq.s32.totalorder %s18, 0
      %p81 = por %p79, %p80
      %p82 = scmp.ne.s32.totalorder %s70, %s71
      %p83 = scmp.eq.s32.totalorder %s19, 1
      %p84 = por %p82, %p83
      %p86 = scmp.ne.s32.totalorder %s71, %s85
      %p87 = scmp.eq.s32.totalorder %s19, 0
      %p88 = por %p86, %p87
      %s90 = sadd.s32 %s89, 1
      %p93 = scmp.eq.s32.totalorder %s13, 1
      %p94 = scmp.ne.s32.totalorder %s89, %s91
      %p95 = scmp.eq.s32.totalorder %s13, 0
      %p96 = por %p94, %p95
      %p97 = scmp.ne.s32.totalorder %s89, %s91
      %p98 = scmp.eq.s32.totalorder %s18, 1
      %p99 = por %p97, %p98
      %p100 = scmp.ne.s32.totalorder %s91, %s92
      %p101 = scmp.eq.s32.totalorder %s18, 0
      %p102 = por %p100, %p101
      %p103 = scmp.ne.s32.totalorder %s91, %s92
      %p104 = scmp.eq.s32.totalorder %s19, 1
      %p105 = por %p103, %p104
      %p107 = scmp.ne.s32.totalorder %s92, %s106
      %p108 = scmp.eq.s32.totalorder %s19, 0
      %p109 = por %p107, %p108
      %s111 = sadd.s32 %s110, 1
      %p114 = scmp.eq.s32.totalorder %s13, 1
      %p115 = scmp.ne.s32.totalorder %s110, %s112
      %p116 = scmp.eq.s32.totalorder %s13, 0
      %p117 = por %p115, %p116
      %p118 = scmp.ne.s32.totalorder %s110, %s112
      %p119 = scmp.eq.s32.totalorder %s18, 1
      %p120 = por %p118, %p119
      %p121 = scmp.ne.s32.totalorder %s112, %s113
      %p122 = scmp.eq.s32.totalorder %s18, 0
      %p123 = por %p121, %p122
      %p124 = scmp.ne.s32.totalorder %s112, %s113
      %p125 = scmp.eq.s32.totalorder %s19, 1
      %p126 = por %p124, %p125
      %p128 = scmp.ne.s32.totalorder %s113, %s127
      %p129 = scmp.eq.s32.totalorder %s19, 0
      %p130 = por %p128, %p129
      %s131 = ssub.s32 %s13, %s20
      %p132 = scmp.eq.s32.totalorder %s131, 0
      %s134 = sadd.s32 %s133, 1
      %s135 = scalar_select %p132, %s133, %s134
      %p138 = pneg %p132
      %p139 = scmp.eq.s32.totalorder %s13, 1
      %p140 = por %p138, %p139
      %p141 = scmp.ne.s32.totalorder %s133, %s136
      %p142 = scmp.eq.s32.totalorder %s13, 0
      %p143 = por %p141, %p142
      %p144 = scmp.ne.s32.totalorder %s133, %s136
      %p145 = scmp.eq.s32.totalorder %s18, 1
      %p146 = por %p144, %p145
      %p147 = scmp.ne.s32.totalorder %s136, %s137
      %p148 = scmp.eq.s32.totalorder %s18, 0
      %p149 = por %p147, %p148
      %p150 = scmp.ne.s32.totalorder %s136, %s137
      %p151 = scmp.eq.s32.totalorder %s19, 1
      %p152 = por %p150, %p151
      %p154 = scmp.ne.s32.totalorder %s137, %s153
      %p155 = scmp.eq.s32.totalorder %s19, 0
      %p156 = por %p154, %p155
      %p157 = scmp.le.s32.totalorder 1, %s13
      %p158 = scmp.lt.s32.totalorder %s13, 3
      %p159 = pnand %p157, %p158
      %p160 = pneg %p159
      // Predicated region
      $region9: #{apply.1} parent=5 // pred_check
        _
      $region10: #{apply.1} parent=5 // pred_check_branch
        %162 = sbr.rel (%p159) target = $region12
      $region11: #{apply.1} parent=5 // pred_region
        %s163 = ssub.s32 %s13, 1
        // Predicated region
        $region13: #{apply.1} parent=11 // pred_check
          %p164 = pneg %p60
        $region14: #{apply.1} parent=11 // pred_check_branch
          %166 = sbr.rel (%p164) target = $region16
        $region15: #{apply.1} parent=11 // pred_region
          %s168 = ssub.s32 1024, 1024
          %169 = vsyncadd [#allocation3], %s168
          %s170 = sshll.u32 [#allocation2], 4
          %s171 = int_to_ptr.vmem [resolvable:$true] %s170
          %176 = dma.hbm_to_vmem [thread:$0]  %s1, 1024, %s171, [#allocation3], 64, 64, 4
        $region16: #{apply.1} parent=11 // pred_fallthru
          _
        // Predicated region
        $region17: #{apply.1} parent=11 // pred_check
          %p177 = pneg %p81
        $region18: #{apply.1} parent=11 // pred_check_branch
          %179 = sbr.rel (%p177) target = $region20
        $region19: #{apply.1} parent=11 // pred_region
          _
        $region20: #{apply.1} parent=11 // pred_fallthru
          _
        // Predicated region
        $region21: #{apply.1} parent=11 // pred_check
          %p180 = pneg %p102
        $region22: #{apply.1} parent=11 // pred_check_branch
          %182 = sbr.rel (%p180) target = $region24
        $region23: #{apply.1} parent=11 // pred_region
          %s184 = ssub.s32 1024, 1024
          %185 = vsyncadd [#allocation5], %s184
          %s186 = sshll.u32 [#allocation4], 4
          %s187 = int_to_ptr.vmem [resolvable:$true] %s186
          %192 = dma.hbm_to_vmem [thread:$0]  %s3, 1024, %s187, [#allocation5], 64, 64, 4
        $region24: #{apply.1} parent=11 // pred_fallthru
          _
        // Predicated region
        $region25: #{apply.1} parent=11 // pred_check
          %p193 = pneg %p123
        $region26: #{apply.1} parent=11 // pred_check_branch
          %195 = sbr.rel (%p193) target = $region28
        $region27: #{apply.1} parent=11 // pred_region
          _
        $region28: #{apply.1} parent=11 // pred_fallthru
          _
      $region12: #{apply.1} parent=5 // pred_fallthru
        _
      %p196 = scmp.lt.s32.totalorder %s13, 2
      // Predicated region
      $region29: #{apply.1} parent=5 // pred_check
        %p197 = pneg %p196
      $region30: #{apply.1} parent=5 // pred_check_branch
        %199 = sbr.rel (%p197) target = $region32
      $region31: #{apply.1} parent=5 // pred_region
        // Predicated region
        $region33: #{apply.1} parent=31 // pred_check
          %p200 = pneg %p33
        $region34: #{apply.1} parent=31 // pred_check_branch
          %202 = sbr.rel (%p200) target = $region36
        $region35: #{apply.1} parent=31 // pred_region
          %p203 = scmp.lt.s32.totalorder %s13, 1
          %s204 = scalar_select %p203, %s13, 1
          %s205 = smul.addr %s204, 8
          %s206 = scalar_lea.vmem %s0, %s205
        $region36: #{apply.1} parent=31 // pred_fallthru
          _
      $region32: #{apply.1} parent=5 // pred_fallthru
        _
      %p207 = scmp.le.s32.totalorder 1, %s13
      %p208 = scmp.lt.s32.totalorder %s13, 3
      %p209 = pnand %p207, %p208
      %p210 = pneg %p209
      // Predicated region
      $region37: #{apply.1} parent=5 // pred_check
        _
      $region38: #{apply.1} parent=5 // pred_check_branch
        %212 = sbr.rel (%p209) target = $region40
      $region39: #{apply.1} parent=5 // pred_region
        %s213 = ssub.s32 %s13, 1
        // Predicated region
        $region41: #{apply.1} parent=39 // pred_check
          %p214 = pneg %p60
        $region42: #{apply.1} parent=39 // pred_check_branch
          %216 = sbr.rel (%p214) target = $region44
        $region43: #{apply.1} parent=39 // pred_region
          %217 = dma.done [#allocation3], 1024
        $region44: #{apply.1} parent=39 // pred_fallthru
          _
        // Predicated region
        $region45: #{apply.1} parent=39 // pred_check
          %p218 = pneg %p102
        $region46: #{apply.1} parent=39 // pred_check_branch
          %220 = sbr.rel (%p218) target = $region48
        $region47: #{apply.1} parent=39 // pred_region
          %221 = dma.done [#allocation5], 1024
        $region48: #{apply.1} parent=39 // pred_fallthru
          _
        %p222 = scmp.lt.s32.totalorder %s18, 1
        %s223 = scalar_select %p222, %s18, 1
        %s224 = smul.addr %s223, 8
        %s225 = scalar_lea.vmem %s0, %s224
        %p226 = pneg %p39
        %p227 = pneg %p36
        %p228 = pneg %p60
        %p229 = pneg %p57
        %p230 = pneg %p81
        %p231 = pneg %p78
        %p232 = pneg %p102
        %p233 = pneg %p99
        %p234 = pneg %p123
        %p235 = pneg %p120
        %p236 = pneg %p149
        %p237 = pneg %p146
        %p238 = scmp.lt.s32.totalorder %s18, 1
        %s239 = scalar_select %p238, %s18, 1
        %s240 = smul.addr %s239, 8
        %s241 = scalar_lea.vmem %s5, %s240
        %p242 = scmp.lt.s32.totalorder %s18, 1
        %s243 = scalar_select %p242, %s18, 1
        %s244 = smul.addr %s243, 8
        %s245 = scalar_lea.vmem %s0, %s244
        %p246 = scmp.lt.s32.totalorder %s18, 1
        %s247 = scalar_select %p246, %s18, 1
        %s248 = smul.addr %s247, 8
        %s249 = scalar_lea.vmem %s5, %s248
        %v251 = vld [vmem:[%s245] sm:$0xff]
        %v252 = vpack.c.bf16 %v251, %v251
        %v253 = vld [vmem:[#allocation2] sm:$0xf]
        %v254 = vld [vmem:[#allocation2 + $0x4] sm:$0xf]
        %v255 = vld [vmem:[#allocation2 + $0x8] sm:$0xf]
        %v256 = vld [vmem:[#allocation2 + $0xc] sm:$0xf]
        %v257 = vld [vmem:[#allocation2 + $0x10] sm:$0xf]
        %v258 = vld [vmem:[#allocation2 + $0x14] sm:$0xf]
        %v259 = vld [vmem:[#allocation2 + $0x18] sm:$0xf]
        %v260 = vld [vmem:[#allocation2 + $0x1c] sm:$0xf]
        %v261 = vld [vmem:[#allocation2 + $0x20] sm:$0xf]
        %v262 = vld [vmem:[#allocation2 + $0x24] sm:$0xf]
        %v263 = vld [vmem:[#allocation2 + $0x28] sm:$0xf]
        %v264 = vld [vmem:[#allocation2 + $0x2c] sm:$0xf]
        %v265 = vld [vmem:[#allocation2 + $0x30] sm:$0xf]
        %v266 = vld [vmem:[#allocation2 + $0x34] sm:$0xf]
        %v267 = vld [vmem:[#allocation2 + $0x38] sm:$0xf]
        %v268 = vld [vmem:[#allocation2 + $0x3c] sm:$0xf]
        %v269 = vld [vmem:[%s2] sm:$0x1]
        %v271 = vlaneseq
        %v272 = vshrl.u32 %v271, 7
        %v273 = vsub.s32 0, %v272
        %v274 = vrot.slane %v269, %v273
        %v292 = vunpack.c.l.b16 %v253
        %v293 = vunpack.c.l.b16 %v254
        %v294 = vunpack.c.l.b16 %v255
        %v295 = vunpack.c.l.b16 %v256
        %v296 = vunpack.c.l.b16 %v257
        %v297 = vunpack.c.l.b16 %v258
        %v298 = vunpack.c.l.b16 %v259
        %v299 = vunpack.c.l.b16 %v260
        %v300 = vunpack.c.l.b16 %v261
        %v301 = vunpack.c.l.b16 %v262
        %v302 = vunpack.c.l.b16 %v263
        %v303 = vunpack.c.l.b16 %v264
        %v304 = vunpack.c.l.b16 %v265
        %v305 = vunpack.c.l.b16 %v266
        %v306 = vunpack.c.l.b16 %v267
        %v307 = vunpack.c.l.b16 %v268
        %v308 = vpack.c.b16 %v293, %v292
        %v309 = vpack.c.b16 %v295, %v294
        %v310 = vpack.c.b16 %v297, %v296
        %v311 = vpack.c.b16 %v299, %v298
        %v312 = vpack.c.b16 %v301, %v300
        %v313 = vpack.c.b16 %v303, %v302
        %v314 = vpack.c.b16 %v305, %v304
        %v315 = vpack.c.b16 %v307, %v306
        %324 = vmatprep.subr.bf16.mxu0 0
        %325 = vmatpush1.bf16.msra.mxu0 %v308
        %326 = vmatprep.subr.bf16.mxu0 0
        %327 = vmatpush1.bf16.msra.mxu0 %v309
        %328 = vmatprep.subr.bf16.mxu0 0
        %329 = vmatpush1.bf16.msra.mxu0 %v310
        %330 = vmatprep.subr.bf16.mxu0 0
        %331 = vmatpush1.bf16.msra.mxu0 %v311
        %332 = vmatprep.subr.bf16.mxu0 0
        %333 = vmatpush1.bf16.msra.mxu0 %v312
        %334 = vmatprep.subr.bf16.mxu0 0
        %335 = vmatpush1.bf16.msra.mxu0 %v313
        %336 = vmatprep.subr.bf16.mxu0 0
        %337 = vmatpush1.bf16.msra.mxu0 %v314
        %338 = vmatprep.subr.bf16.mxu0 0
        %339 = vmatpush1.bf16.msra.mxu0 %v315
        %340 = vmatprep.subr.bf16.mxu0 0
        %341 = vmatpush1.bf16.msra.mxu0 0
        %342 = vmatprep.subr.bf16.mxu0 0
        %343 = vmatpush1.bf16.msra.mxu0 0
        %344 = vmatprep.subr.bf16.mxu0 0
        %345 = vmatpush1.bf16.msra.mxu0 0
        %346 = vmatprep.subr.bf16.mxu0 0
        %347 = vmatpush1.bf16.msra.mxu0 0
        %348 = vmatprep.subr.bf16.mxu0 0
        %349 = vmatpush1.bf16.msra.mxu0 0
        %350 = vmatprep.subr.bf16.mxu0 0
        %351 = vmatpush1.bf16.msra.mxu0 0
        %352 = vmatprep.subr.bf16.mxu0 0
        %353 = vmatpush1.bf16.msra.mxu0 0
        %354 = vmatprep.subr.bf16.mxu0 0
        %355 = vmatpush1.bf16.msra.mxu0 0
        %356 = vmatprep.mubr.bf16.mxu0 0
        %357 = vmatmul.mubr.bf16.gmra.mrb[0].mxu0 %v252
        %v358 = vpop.f32.mrb[0].mxu0
        %v359 = vadd.f32 %v274, %v358
        %v360 = vpop.f32.mrb[0].mxu0
        %v361 = vpop.f32.mrb[0].mxu0
        %v362 = vpop.f32.mrb[0].mxu0
        %363 = vdwg.mxu0
        %v364 = vmax.f32 %v359, 0.0
        %v365 = vpack.c.bf16 %v364, %v364
        %v366 = vld [vmem:[#allocation4] sm:$0xf]
        %v367 = vld [vmem:[#allocation4 + $0x4] sm:$0xf]
        %v368 = vld [vmem:[#allocation4 + $0x8] sm:$0xf]
        %v369 = vld [vmem:[#allocation4 + $0xc] sm:$0xf]
        %v370 = vld [vmem:[#allocation4 + $0x10] sm:$0xf]
        %v371 = vld [vmem:[#allocation4 + $0x14] sm:$0xf]
        %v372 = vld [vmem:[#allocation4 + $0x18] sm:$0xf]
        %v373 = vld [vmem:[#allocation4 + $0x1c] sm:$0xf]
        %v374 = vld [vmem:[#allocation4 + $0x20] sm:$0xf]
        %v375 = vld [vmem:[#allocation4 + $0x24] sm:$0xf]
        %v376 = vld [vmem:[#allocation4 + $0x28] sm:$0xf]
        %v377 = vld [vmem:[#allocation4 + $0x2c] sm:$0xf]
        %v378 = vld [vmem:[#allocation4 + $0x30] sm:$0xf]
        %v379 = vld [vmem:[#allocation4 + $0x34] sm:$0xf]
        %v380 = vld [vmem:[#allocation4 + $0x38] sm:$0xf]
        %v381 = vld [vmem:[#allocation4 + $0x3c] sm:$0xf]
        %v382 = vld [vmem:[%s4] sm:$0x1]
        %v384 = vlaneseq
        %v385 = vshrl.u32 %v384, 7
        %v386 = vsub.s32 0, %v385
        %v387 = vrot.slane %v382, %v386
        %v405 = vunpack.c.l.b16 %v366
        %v406 = vunpack.c.l.b16 %v367
        %v407 = vunpack.c.l.b16 %v368
        %v408 = vunpack.c.l.b16 %v369
        %v409 = vunpack.c.l.b16 %v370
        %v410 = vunpack.c.l.b16 %v371
        %v411 = vunpack.c.l.b16 %v372
        %v412 = vunpack.c.l.b16 %v373
        %v413 = vunpack.c.l.b16 %v374
        %v414 = vunpack.c.l.b16 %v375
        %v415 = vunpack.c.l.b16 %v376
        %v416 = vunpack.c.l.b16 %v377
        %v417 = vunpack.c.l.b16 %v378
        %v418 = vunpack.c.l.b16 %v379
        %v419 = vunpack.c.l.b16 %v380
        %v420 = vunpack.c.l.b16 %v381
        %v421 = vpack.c.b16 %v406, %v405
        %v422 = vpack.c.b16 %v408, %v407
        %v423 = vpack.c.b16 %v410, %v409
        %v424 = vpack.c.b16 %v412, %v411
        %v425 = vpack.c.b16 %v414, %v413
        %v426 = vpack.c.b16 %v416, %v415
        %v427 = vpack.c.b16 %v418, %v417
        %v428 = vpack.c.b16 %v420, %v419
        %437 = vmatprep.subr.bf16.mxu0 0
        %438 = vmatpush1.bf16.msra.mxu0 %v421
        %439 = vmatprep.subr.bf16.mxu0 0
        %440 = vmatpush1.bf16.msra.mxu0 %v422
        %441 = vmatprep.subr.bf16.mxu0 0
        %442 = vmatpush1.bf16.msra.mxu0 %v423
        %443 = vmatprep.subr.bf16.mxu0 0
        %444 = vmatpush1.bf16.msra.mxu0 %v424
        %445 = vmatprep.subr.bf16.mxu0 0
        %446 = vmatpush1.bf16.msra.mxu0 %v425
        %447 = vmatprep.subr.bf16.mxu0 0
        %448 = vmatpush1.bf16.msra.mxu0 %v426
        %449 = vmatprep.subr.bf16.mxu0 0
        %450 = vmatpush1.bf16.msra.mxu0 %v427
        %451 = vmatprep.subr.bf16.mxu0 0
        %452 = vmatpush1.bf16.msra.mxu0 %v428
        %453 = vmatprep.subr.bf16.mxu0 0
        %454 = vmatpush1.bf16.msra.mxu0 0
        %455 = vmatprep.subr.bf16.mxu0 0
        %456 = vmatpush1.bf16.msra.mxu0 0
        %457 = vmatprep.subr.bf16.mxu0 0
        %458 = vmatpush1.bf16.msra.mxu0 0
        %459 = vmatprep.subr.bf16.mxu0 0
        %460 = vmatpush1.bf16.msra.mxu0 0
        %461 = vmatprep.subr.bf16.mxu0 0
        %462 = vmatpush1.bf16.msra.mxu0 0
        %463 = vmatprep.subr.bf16.mxu0 0
        %464 = vmatpush1.bf16.msra.mxu0 0
        %465 = vmatprep.subr.bf16.mxu0 0
        %466 = vmatpush1.bf16.msra.mxu0 0
        %467 = vmatprep.subr.bf16.mxu0 0
        %468 = vmatpush1.bf16.msra.mxu0 0
        %469 = vmatprep.mubr.bf16.mxu0 0
        %470 = vmatmul.mubr.bf16.gmra.mrb[0].mxu0 %v365
        %v471 = vpop.f32.mrb[0].mxu0
        %v472 = vadd.f32 %v387, %v471
        %v473 = vpop.f32.mrb[0].mxu0
        %v474 = vpop.f32.mrb[0].mxu0
        %v475 = vpop.f32.mrb[0].mxu0
        %476 = vdwg.mxu0
        %477 = vst [vmem:[%s249] sm:$0xff] %v472
        %p478 = scmp.lt.s32.totalorder %s18, 1
        %s479 = scalar_select %p478, %s18, 1
        %s480 = smul.addr %s479, 8
        %s481 = scalar_lea.vmem %s5, %s480
        // Predicated region
        $region49: #{apply.1} parent=39 // pred_check
          %p482 = pneg %p146
        $region50: #{apply.1} parent=39 // pred_check_branch
          %484 = sbr.rel (%p482) target = $region52
        $region51: #{apply.1} parent=39 // pred_region
          _
        $region52: #{apply.1} parent=39 // pred_fallthru
          _
      $region40: #{apply.1} parent=5 // pred_fallthru
        _
      %p485 = scmp.le.s32.totalorder 2, %s13
      // Predicated region
      $region53: #{apply.1} parent=5 // pred_check
        %p486 = pneg %p485
      $region54: #{apply.1} parent=5 // pred_check_branch
        %488 = sbr.rel (%p486) target = $region56
      $region55: #{apply.1} parent=5 // pred_region
        %s489 = ssub.s32 %s13, 2
        // Predicated region
        $region57: #{apply.1} parent=55 // pred_check
          %p490 = pneg %p152
        $region58: #{apply.1} parent=55 // pred_check_branch
          %492 = sbr.rel (%p490) target = $region60
        $region59: #{apply.1} parent=55 // pred_region
          %p493 = scmp.lt.s32.totalorder %s19, 1
          %s494 = scalar_select %p493, %s19, 1
          %s495 = smul.addr %s494, 8
          %s496 = scalar_lea.vmem %s5, %s495
        $region60: #{apply.1} parent=55 // pred_fallthru
          _
      $region56: #{apply.1} parent=5 // pred_fallthru
        _
    $region6: #{apply.1} parent=1 // loop_footer
      %s17 = sadd.s32 1, %s13
    $region7: #{apply.1} parent=1 // loop_footer_branch
      %12 = sbr.rel target = $region3
    $region8: #{apply.1} parent=1 // loop_exit
      _
    %497 = vsyncpa [#allocation3], 1
    %s498 = scalar_lea.sflag [#allocation3], 1
    %499 = vsyncpa %s498, 1
    %500 = vsyncpa [#allocation5], 1

</llo_original>
